<compile_context>
chip_gen: v7x
topology: tpu7x:2x2x1
jax: 0.10.0
libtpu: 0.0.40
codegen_flags: <defaults>
</compile_context>

<pallas_src>
import jax
import jax.numpy as jnp
from jax.experimental import pallas as pl
from jax.experimental.pallas import tpu as pltpu


# --------------------------------------------------------------------------
# Tiling plan
# --------------------------------------------------------------------------
def _round_up(n: int, m: int) -> int:
    return ((n + m - 1) // m) * m


def _divisor_tiles(padded_dim: int, unit: int):
    """All tile sizes t (multiples of `unit`) with padded_dim % t == 0, desc."""
    n_units = padded_dim // unit
    return sorted(
        (d * unit for d in range(1, n_units + 1) if n_units % d == 0),
        reverse=True,
    )


def _pick_tile(tight_dim: int, unit: int, cap: int, small_thresh: int):
    """Prefer tight (unit-aligned) padding with a tile that evenly divides it.

    Only pad further (up to one big tile <= cap) if the best divisor tile is
    tiny (< small_thresh) and the extra padding stays <= ~10%.
    """
    best_div = max(t for t in _divisor_tiles(tight_dim, unit) if t <= cap)
    tile, padded = best_div, tight_dim
    if best_div < small_thresh:
        t_alt = min(cap, tight_dim)
        p_alt = _round_up(tight_dim, t_alt)
        if p_alt * 10 <= tight_dim * 11:  # <= 10% extra padding
            tile, padded = t_alt, p_alt
    return tile, padded


def _plan(batch, in_dim, out_dim, tm_cap=512, tn_cap=512, tk_cap=2048):
    mp_tight = _round_up(batch, 8)        # sublane unit
    kp_tight = _round_up(in_dim, 128)     # lane unit
    np_tight = _round_up(out_dim, 128)    # lane unit

    tm, Mp = _pick_tile(mp_tight, 8, tm_cap, 128)
    tk, Kp = _pick_tile(kp_tight, 128, tk_cap, 256)
    tn, Np = _pick_tile(np_tight, 128, tn_cap, 256)

    # v7x: 2 TensorCores share the parallel grid axes -> keep >= 2 parallel
    # blocks when the problem allows it (split N, it only re-reads small x).
    if (Mp // tm) * (Np // tn) < 2:
        for t in _divisor_tiles(Np, 128):
            if t < tn and Np // t >= 2:
                tn = t
                break

    return dict(tm=tm, tn=tn, tk=tk, Mp=Mp, Np=Np, Kp=Kp)


def _pad_params(w, b, plan):
    in_dim, out_dim = w.shape
    Kp, Np = plan["Kp"], plan["Np"]
    if Kp == in_dim and Np == out_dim:
        w_p = w
    else:
        w_p = jnp.pad(w, ((0, Kp - in_dim), (0, Np - out_dim)))
    b_p = (b if Np == out_dim else jnp.pad(b, (0, Np - out_dim))).reshape(1, Np)
    return w_p, b_p


# --------------------------------------------------------------------------
# Kernels
# --------------------------------------------------------------------------
def _kernel_single_k(x_ref, w_ref, b_ref, o_ref):
    # Whole K reduction in one MXU call: no accumulator, no pl.when.
    y = jnp.dot(x_ref[...], w_ref[...], preferred_element_type=jnp.float32)
    y = y + b_ref[...]                       # (1, tn) broadcasts over rows
    o_ref[...] = jnp.maximum(y, 0.0).astype(o_ref.dtype)


def _kernel_multi_k_f32(x_ref, w_ref, b_ref, o_ref):
    # Output block index map ignores k -> o_ref is K-resident; accumulate
    # directly into it (f32 output), no VMEM scratch needed.
    k = pl.program_id(2)

    @pl.when(k == 0)
    def _():
        o_ref[...] = jnp.zeros_like(o_ref)

    o_ref[...] += jnp.dot(
        x_ref[...], w_ref[...], preferred_element_type=jnp.float32
    )

    @pl.when(k == pl.num_programs(2) - 1)
    def _():
        o_ref[...] = jnp.maximum(o_ref[...] + b_ref[...], 0.0)


def _kernel_multi_k_acc(x_ref, w_ref, b_ref, o_ref, acc_ref):
    # Generic path (non-f32 output): accumulate in an f32 scratch.
    k = pl.program_id(2)

    @pl.when(k == 0)
    def _():
        acc_ref[...] = jnp.zeros_like(acc_ref)

    acc_ref[...] += jnp.dot(
        x_ref[...], w_ref[...], preferred_element_type=jnp.float32
    )

    @pl.when(k == pl.num_programs(2) - 1)
    def _():
        y = acc_ref[...] + b_ref[...]
        o_ref[...] = jnp.maximum(y, 0.0).astype(o_ref.dtype)


# --------------------------------------------------------------------------
# Wrappers
# --------------------------------------------------------------------------
def _hidden_block_padded(x, w_p, b_p, out_dim, plan):
    B, in_dim = x.shape
    tm, tn, tk = plan["tm"], plan["tn"], plan["tk"]
    Mp, Np, Kp = plan["Mp"], plan["Np"], plan["Kp"]

    if Mp == B and Kp == in_dim:
        x_p = x
    else:
        # Zero K-padding contributes nothing; padded M rows are sliced off.
        x_p = jnp.pad(x, ((0, Mp - B), (0, Kp - in_dim)))

    m_grid, n_grid, k_grid = Mp // tm, Np // tn, Kp // tk
    out_dtype = x.dtype

    # Honest traffic estimate: x re-read per N block, w re-read per M block.
    flops = 2 * Mp * Np * Kp
    bytes_accessed = 4 * (n_grid * Mp * Kp + m_grid * Kp * Np + Mp * Np + Np)
    cost = pl.CostEstimate(
        flops=flops, transcendentals=0, bytes_accessed=bytes_accessed
    )
    cparams = pltpu.CompilerParams(
        dimension_semantics=("parallel", "parallel")
        + (("arbitrary",) if k_grid > 1 else ()),
        # Working set with 512/512/2048 caps stays < ~20 MiB double-buffered:
        # safe on v5e/v6e (128 MiB VMEM) and v7x (64 MiB VMEM).
        vmem_limit_bytes=48 * 1024 * 1024,
    )

    if k_grid == 1:
        grid = (n_grid, m_grid)
        in_specs = [
            pl.BlockSpec((tm, tk), lambda j, i: (i, 0)),
            pl.BlockSpec((tk, tn), lambda j, i: (0, j)),
            pl.BlockSpec((1, tn), lambda j, i: (0, j)),
        ]
        out_spec = pl.BlockSpec((tm, tn), lambda j, i: (i, j))
        kernel = _kernel_single_k
        scratch = []
    else:
        grid = (n_grid, m_grid, k_grid)
        in_specs = [
            pl.BlockSpec((tm, tk), lambda j, i, k: (i, k)),
            pl.BlockSpec((tk, tn), lambda j, i, k: (k, j)),
            pl.BlockSpec((1, tn), lambda j, i, k: (0, j)),
        ]
        out_spec = pl.BlockSpec((tm, tn), lambda j, i, k: (i, j))
        if out_dtype == jnp.float32:
            kernel = _kernel_multi_k_f32
            scratch = []
        else:
            kernel = _kernel_multi_k_acc
            scratch = [pltpu.VMEM((tm, tn), jnp.float32)]

    y_p = pl.pallas_call(
        kernel,
        out_shape=jax.ShapeDtypeStruct((Mp, Np), out_dtype),
        grid_spec=pltpu.PrefetchScalarGridSpec(
            num_scalar_prefetch=0,
            grid=grid,
            in_specs=in_specs,
            out_specs=out_spec,
            scratch_shapes=scratch,
        ),
        compiler_params=cparams,
        cost_estimate=cost,
    )(x_p, w_p, b_p)

    if Mp == B and Np == out_dim:
        return y_p
    return y_p[:B, :out_dim]


def hidden_block(x, w, b, *, tm_cap=512, tn_cap=512, tk_cap=2048):
    """relu(x @ w + b).  x: (B, in_dim), w: (in_dim, out_dim), b: (out_dim,)."""
    B, in_dim = x.shape
    out_dim = w.shape[1]
    plan = _plan(B, in_dim, out_dim, tm_cap, tn_cap, tk_cap)
    w_p, b_p = _pad_params(w, b, plan)
    return _hidden_block_padded(x, w_p, b_p, out_dim, plan)


def make_hidden_block(w, b, batch_size, *, tm_cap=512, tn_cap=512, tk_cap=2048):
    """Pre-pads weight/bias once (avoids per-call jnp.pad HBM rewrite of w)."""
    in_dim, out_dim = w.shape
    plan = _plan(batch_size, in_dim, out_dim, tm_cap, tn_cap, tk_cap)
    w_p, b_p = _pad_params(w, b, plan)

    def fwd(x):
        return _hidden_block_padded(x, w_p, b_p, out_dim, plan)

    return fwd


def reference(x, w, b):
    return jnp.maximum(x @ w + b[None, :], 0.0)


if __name__ == "__main__":
    # 1) Small shapes consistent with the module: batch=8, in_dim=32, out_dim=64.
    B, IN_DIM, OUT_DIM = 8, 32, 64
    key = jax.random.PRNGKey(0)
    kx, kw, kb = jax.random.split(key, 3)

    # nn.Linear-style init: uniform in [-1/sqrt(in_dim), 1/sqrt(in_dim)].
    bound = 1.0 / jnp.sqrt(jnp.float32(IN_DIM))
    x = jax.random.normal(kx, (B, IN_DIM), dtype=jnp.float32)
    w = jax.random.uniform(kw, (IN_DIM, OUT_DIM), jnp.float32, -bound, bound)
    b = jax.random.uniform(kb, (OUT_DIM,), jnp.float32, -bound, bound)

    y = jax.block_until_ready(hidden_block(x, w, b))
    assert y.shape == (B, OUT_DIM)
    assert jnp.allclose(y, reference(x, w, b), atol=1e-5, rtol=1e-5)

    # 2) Unaligned shapes: tight padding + multi-block N grid + pre-padded weights.
    B2, IN2, OUT2 = 300, 384, 520
    kx2, kw2, kb2 = jax.random.split(jax.random.PRNGKey(1), 3)
    x2 = jax.random.normal(kx2, (B2, IN2), dtype=jnp.float32)
    w2 = jax.random.normal(kw2, (IN2, OUT2), dtype=jnp.float32) * 0.05
    b2 = jax.random.normal(kb2, (OUT2,), dtype=jnp.float32) * 0.05
    fwd2 = make_hidden_block(w2, b2, B2)
    y2 = jax.block_until_ready(fwd2(x2))
    assert y2.shape == (B2, OUT2)
    assert jnp.allclose(y2, reference(x2, w2, b2), atol=1e-4, rtol=1e-4)

    # 3) Large K: exercises the tiled-K path accumulating directly into o_ref.
    B3, IN3, OUT3 = 64, 4096, 256
    kx3, kw3, kb3 = jax.random.split(jax.random.PRNGKey(2), 3)
    x3 = jax.random.normal(kx3, (B3, IN3), dtype=jnp.float32)
    w3 = jax.random.normal(kw3, (IN3, OUT3), dtype=jnp.float32) * 0.02
    b3 = jax.random.normal(kb3, (OUT3,), dtype=jnp.float32) * 0.02
    y3 = jax.block_until_ready(hidden_block(x3, w3, b3))
    assert y3.shape == (B3, OUT3)
    assert jnp.allclose(y3, reference(x3, w3, b3), atol=1e-3, rtol=1e-3)

    print("KERNEL_OK")
</pallas_src>

<mosaic_0001>
module attributes {stable_mosaic.version = 11 : i64} {
  func.func @_kernel_single_k(%arg0: i32, %arg1: i32, %arg2: memref<8x128xf32, #tpu.memory_space<vmem>>, %arg3: memref<128x128xf32, #tpu.memory_space<vmem>>, %arg4: memref<1x128xf32, #tpu.memory_space<vmem>>, %arg5: memref<8x128xf32, #tpu.memory_space<vmem>>) attributes {dimension_semantics = [#tpu.dimension_semantics<parallel>, #tpu.dimension_semantics<parallel>], iteration_bounds = array<i64: 1, 1>, scalar_prefetch = 0 : i64, scratch_operands = 0 : i64, tpu.core_type = #tpu.core_type<tc>, window_params = [{transform_indices = @transform_0, window_bounds = array<i64: 8, 128>}, {transform_indices = @transform_1, window_bounds = array<i64: 128, 128>}, {transform_indices = @transform_2, window_bounds = array<i64: 1, 128>}, {transform_indices = @transform_3, window_bounds = array<i64: 8, 128>}]} {
    %c0 = arith.constant 0 : index
    %c0_0 = arith.constant 0 : index
    %0 = vector.load %arg2[%c0, %c0_0] : memref<8x128xf32, #tpu.memory_space<vmem>>, vector<8x128xf32>
    %c0_1 = arith.constant 0 : index
    %c0_2 = arith.constant 0 : index
    %1 = vector.load %arg3[%c0_1, %c0_2] : memref<128x128xf32, #tpu.memory_space<vmem>>, vector<128x128xf32>
    %cst = arith.constant dense<0.000000e+00> : vector<8x128xf32>
    %2 = tpu.matmul %0, %1, %cst {dimension_numbers = #tpu.dot_dimension_numbers<[1], [0], [0], [1], [0, 0, 1, 1], [], []>} : vector<8x128xf32>, vector<128x128xf32>, vector<8x128xf32> -> vector<8x128xf32>
    %c0_3 = arith.constant 0 : index
    %c0_4 = arith.constant 0 : index
    %3 = vector.load %arg4[%c0_3, %c0_4] : memref<1x128xf32, #tpu.memory_space<vmem>>, vector<1x128xf32>
    %4 = vector.broadcast %3 : vector<1x128xf32> to vector<8x128xf32>
    %5 = arith.addf %2, %4 : vector<8x128xf32>
    %cst_5 = arith.constant 0.000000e+00 : f32
    %6 = vector.broadcast %cst_5 : f32 to vector<8x128xf32>
    %7 = arith.maximumf %5, %6 : vector<8x128xf32>
    %c0_6 = arith.constant 0 : index
    %c0_7 = arith.constant 0 : index
    %8 = vector.load %arg5[%c0_6, %c0_7] : memref<8x128xf32, #tpu.memory_space<vmem>>, vector<8x128xf32>
    tpu.vector_store %arg5[%c0_6, %c0_7], %7 {strides = array<i32>} : memref<8x128xf32, #tpu.memory_space<vmem>>, vector<8x128xf32>,
    return
  }
  func.func @transform_0(%arg0: i32, %arg1: i32) -> (i32, i32) {
    %c0_i32 = arith.constant 0 : i32
    %c0_i32_0 = arith.constant 0 : i32
    return %arg1, %c0_i32 : i32, i32
  }
  func.func @transform_1(%arg0: i32, %arg1: i32) -> (i32, i32) {
    %c0_i32 = arith.constant 0 : i32
    %c0_i32_0 = arith.constant 0 : i32
    return %c0_i32, %arg0 : i32, i32
  }
  func.func @transform_2(%arg0: i32, %arg1: i32) -> (i32, i32) {
    %c0_i32 = arith.constant 0 : i32
    %c0_i32_0 = arith.constant 0 : i32
    return %c0_i32, %arg0 : i32, i32
  }
  func.func @transform_3(%arg0: i32, %arg1: i32) -> (i32, i32) {
    %c0_i32 = arith.constant 0 : i32
    return %arg1, %arg0 : i32, i32
  }
}

</mosaic_0001>

<llo_original>
// kernel: tpu_custom_call.1
$region0: #{tpu_custom_call.1}
  #allocation0 [shape = 'u32[]', space=smem, size = 0x4, offset = 0x4, fixed_abs, tag = 'smem constant byte address 0x4 - core index']
  #allocation1 [shape = 'u32[144,128]{1,0:T(1,128)}', space=vmem, size = 0x12000, scoped, tag = 'internal scratch']
  %s0 = inlined_call_operand.hbm [shape: f32[8,128], index: 0, kind: input, shape index: {}]
  %s1 = inlined_call_operand.hbm [shape: f32[128,128], index: 1, kind: input, shape index: {}]
  %s2 = inlined_call_operand.vmem [shape: f32[1,128], index: 2, kind: input, shape index: {}]
  %s3 = inlined_call_operand.hbm [shape: f32[8,128], index: 3, kind: output, shape index: {}]
  %s4 = sld [smem:[#allocation0]]
  $region30: #{tpu_custom_call.1} parent=0
    _
  %s6 = ssub.s32 1, %s4
  %s7 = scalar_select 0, %s6, %s4
  $region1: #{tpu_custom_call.1} parent=0
    #allocation2 [shape = 'u8[4096]{0}', space=vmem, size = 0x1000, scoped, tag = 'input window, operand 0, single buffered']
    #allocation3 [shape = 's32[1]{0}', space=sflag, size = 0x4, scoped, tag = 'scoped memory for tpu_custom_call.1']
    #allocation4 [shape = 's32[1]{0}', space=sflag, size = 0x4, scoped, tag = 'scoped memory for tpu_custom_call.1']
    #allocation5 [shape = 'u8[65536]{0}', space=vmem, size = 0x10000, scoped, tag = 'input window, operand 1, single buffered']
    #allocation6 [shape = 's32[1]{0}', space=sflag, size = 0x4, scoped, tag = 'scoped memory for tpu_custom_call.1']
    #allocation7 [shape = 'u8[4096]{0}', space=vmem, size = 0x1000, scoped, tag = 'output window, operand 0, single buffered']
    %8 = vsyncpa [#allocation3], 0
    %9 = vsyncpa [#allocation6], 0
    %10 = vsyncpa [#allocation4], 0
    // Predicated region
    $region2: #{tpu_custom_call.1} parent=1 // pred_check
      _
    $region3: #{tpu_custom_call.1} parent=1 // pred_check_branch
      %12 = sbr.rel (0) target = $region5
    $region4: #{tpu_custom_call.1} parent=1 // pred_region
      %s14 = ssub.s32 128, 128
      %15 = vsyncadd [#allocation3], %s14
      %s17 = sshll.u32 [#allocation2], 4
      %s18 = int_to_ptr.vmem [resolvable:$true] %s17
      %20 = dma.hbm_to_vmem [thread:$0]  %s0, 128, %s18, [#allocation3]
    $region5: #{tpu_custom_call.1} parent=1 // pred_fallthru
      _
    // Predicated region
    $region6: #{tpu_custom_call.1} parent=1 // pred_check
      _
    $region7: #{tpu_custom_call.1} parent=1 // pred_check_branch
      %22 = sbr.rel (0) target = $region9
    $region8: #{tpu_custom_call.1} parent=1 // pred_region
      %s24 = ssub.s32 2048, 2048
      %25 = vsyncadd [#allocation6], %s24
      %s26 = sshll.u32 [#allocation5], 4
      %s27 = int_to_ptr.vmem [resolvable:$true] %s26
      %32 = dma.hbm_to_vmem [thread:$0]  %s1, 2048, %s27, [#allocation6], 128, 128, 8
    $region9: #{tpu_custom_call.1} parent=1 // pred_fallthru
      _
    // Predicated region
    $region10: #{tpu_custom_call.1} parent=1 // pred_check
      _
    $region11: #{tpu_custom_call.1} parent=1 // pred_check_branch
      %34 = sbr.rel (0) target = $region13
    $region12: #{tpu_custom_call.1} parent=1 // pred_region
      _
    $region13: #{tpu_custom_call.1} parent=1 // pred_fallthru
      _
    // Predicated region
    $region14: #{tpu_custom_call.1} parent=1 // pred_check
      _
    $region15: #{tpu_custom_call.1} parent=1 // pred_check_branch
      %36 = sbr.rel (0) target = $region17
    $region16: #{tpu_custom_call.1} parent=1 // pred_region
      %37 = dma.done [#allocation3], 128
    $region17: #{tpu_custom_call.1} parent=1 // pred_fallthru
      _
    // Predicated region
    $region18: #{tpu_custom_call.1} parent=1 // pred_check
      _
    $region19: #{tpu_custom_call.1} parent=1 // pred_check_branch
      %39 = sbr.rel (0) target = $region21
    $region20: #{tpu_custom_call.1} parent=1 // pred_region
      %40 = dma.done [#allocation6], 2048
    $region21: #{tpu_custom_call.1} parent=1 // pred_fallthru
      _
    %v41 = vld [vmem:[#allocation2] sm:$0xff]
    %v42 = vld [vmem:[#allocation5] sm:$0xff]
    %v43 = vld [vmem:[#allocation5 + $0x8] sm:$0xff]
    %v44 = vld [vmem:[#allocation5 + $0x10] sm:$0xff]
    %v45 = vld [vmem:[#allocation5 + $0x18] sm:$0xff]
    %v46 = vld [vmem:[#allocation5 + $0x20] sm:$0xff]
    %v47 = vld [vmem:[#allocation5 + $0x28] sm:$0xff]
    %v48 = vld [vmem:[#allocation5 + $0x30] sm:$0xff]
    %v49 = vld [vmem:[#allocation5 + $0x38] sm:$0xff]
    %v50 = vld [vmem:[#allocation5 + $0x40] sm:$0xff]
    %v51 = vld [vmem:[#allocation5 + $0x48] sm:$0xff]
    %v52 = vld [vmem:[#allocation5 + $0x50] sm:$0xff]
    %v53 = vld [vmem:[#allocation5 + $0x58] sm:$0xff]
    %v54 = vld [vmem:[#allocation5 + $0x60] sm:$0xff]
    %v55 = vld [vmem:[#allocation5 + $0x68] sm:$0xff]
    %v56 = vld [vmem:[#allocation5 + $0x70] sm:$0xff]
    %v57 = vld [vmem:[#allocation5 + $0x78] sm:$0xff]
    %v58 = vld [vmem:[%s2] sm:$0x1]
    %v60 = vlaneseq
    %v61 = vshrl.u32 %v60, 7
    %v62 = vsub.s32 0, %v61
    %v63 = vrot.slane %v58, %v62
    %65 = vmatprep.subr.mxu0 0.0
    %66 = vmatpush1.msra.mxu0 %v42
    %67 = vmatprep.subr.mxu0 0.0
    %68 = vmatpush1.msra.mxu0 %v43
    %69 = vmatprep.subr.mxu0 0.0
    %70 = vmatpush1.msra.mxu0 %v44
    %71 = vmatprep.subr.mxu0 0.0
    %72 = vmatpush1.msra.mxu0 %v45
    %73 = vmatprep.subr.mxu0 0.0
    %74 = vmatpush1.msra.mxu0 %v46
    %75 = vmatprep.subr.mxu0 0.0
    %76 = vmatpush1.msra.mxu0 %v47
    %77 = vmatprep.subr.mxu0 0.0
    %78 = vmatpush1.msra.mxu0 %v48
    %79 = vmatprep.subr.mxu0 0.0
    %80 = vmatpush1.msra.mxu0 %v49
    %81 = vmatprep.subr.mxu0 0.0
    %82 = vmatpush1.msra.mxu0 %v50
    %83 = vmatprep.subr.mxu0 0.0
    %84 = vmatpush1.msra.mxu0 %v51
    %85 = vmatprep.subr.mxu0 0.0
    %86 = vmatpush1.msra.mxu0 %v52
    %87 = vmatprep.subr.mxu0 0.0
    %88 = vmatpush1.msra.mxu0 %v53
    %89 = vmatprep.subr.mxu0 0.0
    %90 = vmatpush1.msra.mxu0 %v54
    %91 = vmatprep.subr.mxu0 0.0
    %92 = vmatpush1.msra.mxu0 %v55
    %93 = vmatprep.subr.mxu0 0.0
    %94 = vmatpush1.msra.mxu0 %v56
    %95 = vmatprep.subr.mxu0 0.0
    %96 = vmatpush1.msra.mxu0 %v57
    %97 = vmatprep.subr.mxu0 0.0
    %98 = vmatpush1.msra.mxu0 0.0
    %99 = vmatprep.subr.mxu0 0.0
    %100 = vmatpush1.msra.mxu0 0.0
    %101 = vmatprep.subr.mxu0 0.0
    %102 = vmatpush1.msra.mxu0 0.0
    %103 = vmatprep.subr.mxu0 0.0
    %104 = vmatpush1.msra.mxu0 0.0
    %105 = vmatprep.subr.mxu0 0.0
    %106 = vmatpush1.msra.mxu0 0.0
    %107 = vmatprep.subr.mxu0 0.0
    %108 = vmatpush1.msra.mxu0 0.0
    %109 = vmatprep.subr.mxu0 0.0
    %110 = vmatpush1.msra.mxu0 0.0
    %111 = vmatprep.subr.mxu0 0.0
    %112 = vmatpush1.msra.mxu0 0.0
    %113 = vmatprep.subr.mxu0 0.0
    %114 = vmatpush1.msra.mxu0 0.0
    %115 = vmatprep.subr.mxu0 0.0
    %116 = vmatpush1.msra.mxu0 0.0
    %117 = vmatprep.subr.mxu0 0.0
    %118 = vmatpush1.msra.mxu0 0.0
    %119 = vmatprep.subr.mxu0 0.0
    %120 = vmatpush1.msra.mxu0 0.0
    %121 = vmatprep.subr.mxu0 0.0
    %122 = vmatpush1.msra.mxu0 0.0
    %123 = vmatprep.subr.mxu0 0.0
    %124 = vmatpush1.msra.mxu0 0.0
    %125 = vmatprep.subr.mxu0 0.0
    %126 = vmatpush1.msra.mxu0 0.0
    %127 = vmatprep.subr.mxu0 0.0
    %128 = vmatpush1.msra.mxu0 0.0
    %129 = vmatprep.mubr.f32.mxu0 0.0
    %130 = vmatmul.mubr.f32.gmra.mrb[0].mxu0 %v41
    %v131 = vpop.f32.mrb[0].mxu0
    %v132 = vadd.f32 %v63, %v131
    %v133 = vpop.f32.mrb[0].mxu0
    %134 = vdwg.mxu0
    %v135 = vmax.f32 %v132, 0.0
    %136 = vst [vmem:[#allocation7] sm:$0xff] %v135
    // Predicated region
    $region22: #{tpu_custom_call.1} parent=1 // pred_check
      _
    $region23: #{tpu_custom_call.1} parent=1 // pred_check_branch
      %138 = sbr.rel (0) target = $region25
    $region24: #{tpu_custom_call.1} parent=1 // pred_region
      %s140 = ssub.s32 128, 128
      %141 = vsyncadd [#allocation4], %s140
      %s143 = sshll.u32 [#allocation7], 4
      %s144 = int_to_ptr.vmem [resolvable:$true] %s143
      %146 = dma.vmem_to_hbm [thread:$0]  %s144, 128, %s3, [#allocation4]
    $region25: #{tpu_custom_call.1} parent=1 // pred_fallthru
      _
    // Predicated region
    $region26: #{tpu_custom_call.1} parent=1 // pred_check
      _
    $region27: #{tpu_custom_call.1} parent=1 // pred_check_branch
      %148 = sbr.rel (0) target = $region29
    $region28: #{tpu_custom_call.1} parent=1 // pred_region
      %149 = dma.done [#allocation4], 128
    $region29: #{tpu_custom_call.1} parent=1 // pred_fallthru
      _
    %150 = vsyncpa [#allocation3], 1
    %151 = vsyncpa [#allocation6], 1
    %152 = vsyncpa [#allocation4], 1

</llo_original>
